<compile_context>
chip_gen: v6e
topology: v6e:2x2x1
jax: 0.10.0
libtpu: 0.0.40
codegen_flags: <defaults>
</compile_context>

<pallas_src>
import functools

import numpy as np
import jax
import jax.numpy as jnp
from jax import lax
from jax.experimental import pallas as pl
from jax.experimental.pallas import tpu as pltpu


def position_encoding_init(n_position, emb_dim):
    """Replicates the PyTorch sinusoid table init exactly (row 0 is zeros)."""
    pe = np.array(
        [
            [pos / np.power(10000, 2 * (j // 2) / emb_dim) for j in range(emb_dim)]
            if pos != 0
            else np.zeros(emb_dim)
            for pos in range(n_position)
        ]
    )
    pe[1:, 0::2] = np.sin(pe[1:, 0::2])
    pe[1:, 1::2] = np.cos(pe[1:, 1::2])
    return jnp.asarray(pe, dtype=jnp.float32)


def _pos_encoder_kernel(seq_row_ref, seq_col_ref, tri_ref, table_ref, out_ref, *, vocab_size):
    # seq_row_ref : (1, TM) int32  -- token ids of this chunk, tokens on lanes
    # seq_col_ref : (TM, 1) int32  -- same ids, tokens on sublanes (for the one-hot)
    # tri_ref     : (TM, TM) int32 -- block-diagonal inclusive lower-triangular (per-sentence)
    # table_ref   : (V+P, D) f32   -- [word_table ; pos_table], row 0 of each half is zeros
    # out_ref     : (TM, D) f32    -- word_emb + pos_emb for the chunk's tokens
    TM = seq_col_ref.shape[0]
    K = table_ref.shape[0]
    V = vocab_size

    seq_row = seq_row_ref[...]                                 # (1, TM)
    seq_col = seq_col_ref[...]                                 # (TM, 1)
    mask_row = (seq_row != 0).astype(jnp.int32)                # (1, TM)
    mask_col = (seq_col != 0).astype(jnp.int32)                # (TM, 1)

    # Absolute positions: inclusive count of non-pad tokens within each sentence, zeroed at
    # padding.  Exact int32 prefix sum (VPU multiply + XLU lane reduction, no MXU, no rounding).
    cum = jnp.sum(tri_ref[...] * mask_row, axis=1, keepdims=True)   # (TM, 1)
    pos_col = cum * mask_col                                        # (TM, 1), 0 where padded

    # Fused double gather: one-hot over the concatenated [word-id | V + position] axis; a single
    # MXU matmul returns word_emb + pos_emb.  Padding picks row 0 of both halves (zeros).
    k_iota = lax.broadcasted_iota(jnp.int32, (TM, K), 1)       # (TM, V+P)
    word_id = jnp.clip(seq_col, 0, V - 1)                      # clamp OOB ids (gather semantics)
    pos_id = pos_col + V
    onehot = jnp.logical_or(k_iota == word_id, k_iota == pos_id).astype(jnp.float32)
    out_ref[...] = jnp.dot(
        onehot, table_ref[...], preferred_element_type=jnp.float32
    ).astype(out_ref.dtype)


def positional_encoder(word_seq, word_table, pos_table, *, rows_per_step=None):
    """word_seq: (B, L) int; word_table: (V, D); pos_table: (max_len+1, D) -> (B, L, D) f32."""
    B, L = word_seq.shape
    V, D = word_table.shape
    P = pos_table.shape[0]
    K = V + P

    # Sentences per grid step: aim for ~256 token rows per MXU call, must divide B exactly.
    if rows_per_step is None:
        bt = min(B, max(1, 256 // max(L, 1)))
    else:
        bt = min(B, max(1, rows_per_step))
    while B % bt != 0:
        bt -= 1
    G = B // bt          # grid steps
    TM = bt * L          # token rows per step (whole sentences only)

    word_seq = word_seq.astype(jnp.int32)
    # Layout plumbing only: present the chunked ids both lane- and sublane-major so the kernel
    # never needs an in-kernel transpose.
    seq_flat = word_seq.reshape(G, TM)
    seq_row = seq_flat[:, None, :]                               # (G, 1, TM)
    seq_col = seq_flat[:, :, None]                               # (G, TM, 1)

    # Trace-time constant: block-diagonal inclusive lower-triangular operator (prefix count that
    # resets at every sentence boundary inside the chunk).
    t = np.arange(TM)
    tri = ((t[:, None] // L == t[None, :] // L) & (t[None, :] <= t[:, None])).astype(np.int32)
    tri = jnp.asarray(tri)                                       # (TM, TM)

    # Concatenate the two embedding tables once so one matmul performs both gathers and the add.
    table = jnp.concatenate(
        [word_table.astype(jnp.float32), pos_table.astype(jnp.float32)], axis=0
    )                                                            # (V+P, D)

    kernel = functools.partial(_pos_encoder_kernel, vocab_size=V)
    out = pl.pallas_call(
        kernel,
        out_shape=jax.ShapeDtypeStruct((G, TM, D), jnp.float32),
        grid=(G,),
        in_specs=[
            pl.BlockSpec((None, 1, TM), lambda g: (g, 0, 0)),    # chunk ids, row layout
            pl.BlockSpec((None, TM, 1), lambda g: (g, 0, 0)),    # chunk ids, col layout
            pl.BlockSpec((TM, TM), lambda g: (0, 0)),            # triangular, VMEM-resident
            pl.BlockSpec((K, D), lambda g: (0, 0)),              # combined table, VMEM-resident
        ],
        out_specs=pl.BlockSpec((None, TM, D), lambda g: (g, 0, 0)),
        compiler_params=pltpu.CompilerParams(
            dimension_semantics=("parallel",)),
    )(seq_row, seq_col, tri, table)
    return out.reshape(B, L, D)


def _reference(word_seq, word_table, pos_table):
    mask = (word_seq != 0)
    pos = jnp.cumsum(mask.astype(jnp.int32), axis=1) * mask.astype(jnp.int32)
    return word_table[word_seq] + pos_table[pos]


if __name__ == "__main__":
    # Module hyper-parameters (small, consistent with the forward pass).
    vocab_size, emb_dim, max_len, batch_size = 32, 32, 8, 2

    key = jax.random.PRNGKey(0)
    k_emb, k_seq = jax.random.split(key)

    # src_word_emb weights: deterministic normal init, row 0 zeroed (padding_idx=0).
    word_table = jax.random.normal(k_emb, (vocab_size, emb_dim), dtype=jnp.float32)
    word_table = word_table.at[0].set(0.0)

    # position_enc weights: sinusoid table, n_position = max_len + 1 (row 0 zeros, padding_idx=0).
    pos_table = position_encoding_init(max_len + 1, emb_dim)

    # Example token ids with trailing / interleaved padding zeros.
    word_seq = jax.random.randint(k_seq, (batch_size, max_len), 1, vocab_size, dtype=jnp.int32)
    word_seq = word_seq.at[0, 6:].set(0)   # pad end of sequence 0
    word_seq = word_seq.at[1, 3].set(0)    # pad in the middle of sequence 1
    word_seq = word_seq.at[1, 7].set(0)

    out = positional_encoder(word_seq, word_table, pos_table)
    out = jax.block_until_ready(out)

    ref = _reference(word_seq, word_table, pos_table)
    np.testing.assert_allclose(np.asarray(out), np.asarray(ref), rtol=1e-5, atol=1e-5)

    print("KERNEL_OK")
</pallas_src>

<mosaic_0001>
module attributes {stable_mosaic.version = 11 : i64} {
  func.func @_pos_encoder_kernel(%arg0: i32, %arg1: memref<1x1x16xi32, #tpu.memory_space<vmem>>, %arg2: memref<1x16x1xi32, #tpu.memory_space<vmem>>, %arg3: memref<16x16xi32, #tpu.memory_space<vmem>>, %arg4: memref<41x32xf32, #tpu.memory_space<vmem>>, %arg5: memref<1x16x32xf32, #tpu.memory_space<vmem>>) attributes {dimension_semantics = [#tpu.dimension_semantics<parallel>], iteration_bounds = array<i64: 1>, scalar_prefetch = 0 : i64, scratch_operands = 0 : i64, tpu.core_type = #tpu.core_type<tc>, window_params = [{transform_indices = @transform_0, window_bounds = array<i64: 1, 1, 16>}, {transform_indices = @transform_1, window_bounds = array<i64: 1, 16, 1>}, {pipeline_mode = #tpu.pipeline_mode<synchronous>, transform_indices = @transform_2, window_bounds = array<i64: 16, 16>}, {pipeline_mode = #tpu.pipeline_mode<synchronous>, transform_indices = @transform_3, window_bounds = array<i64: 41, 32>}, {transform_indices = @transform_4, window_bounds = array<i64: 1, 16, 32>}]} {
    %c0 = arith.constant 0 : index
    %c0_0 = arith.constant 0 : index
    %c0_1 = arith.constant 0 : index
    %0 = vector.load %arg1[%c0, %c0_0, %c0_1] : memref<1x1x16xi32, #tpu.memory_space<vmem>>, vector<1x1x16xi32>
    %1 = vector.shape_cast %0 : vector<1x1x16xi32> to vector<1x16xi32>
    %c0_2 = arith.constant 0 : index
    %c0_3 = arith.constant 0 : index
    %c0_4 = arith.constant 0 : index
    %2 = vector.load %arg2[%c0_2, %c0_3, %c0_4] : memref<1x16x1xi32, #tpu.memory_space<vmem>>, vector<1x16x1xi32>
    %3 = vector.shape_cast %2 : vector<1x16x1xi32> to vector<16x1xi32>
    %c0_i32 = arith.constant 0 : i32
    %4 = vector.broadcast %c0_i32 : i32 to vector<1x16xi32>
    %5 = arith.cmpi ne, %1, %4 : vector<1x16xi32>
    %6 = arith.extui %5 : vector<1x16xi1> to vector<1x16xi32>
    %c0_i32_5 = arith.constant 0 : i32
    %7 = vector.broadcast %c0_i32_5 : i32 to vector<16x1xi32>
    %8 = arith.cmpi ne, %3, %7 : vector<16x1xi32>
    %9 = arith.extui %8 : vector<16x1xi1> to vector<16x1xi32>
    %c0_6 = arith.constant 0 : index
    %c0_7 = arith.constant 0 : index
    %10 = vector.load %arg3[%c0_6, %c0_7] : memref<16x16xi32, #tpu.memory_space<vmem>>, vector<16x16xi32>
    %11 = vector.broadcast %6 : vector<1x16xi32> to vector<16x16xi32>
    %12 = arith.muli %10, %11 : vector<16x16xi32>
    %cst = arith.constant dense<0> : vector<16xi32>
    %13 = vector.multi_reduction <add>, %12, %cst [1] : vector<16x16xi32> to vector<16xi32>
    %14 = vector.shape_cast %13 : vector<16xi32> to vector<16x1xi32>
    %15 = arith.muli %14, %9 : vector<16x1xi32>
    %16 = tpu.iota {dimensions = array<i32: 1>} : vector<16x41xi32>
    %c0_i32_8 = arith.constant 0 : i32
    %c31_i32 = arith.constant 31 : i32
    %17 = vector.broadcast %c0_i32_8 : i32 to vector<16x1xi32>
    %18 = arith.maxsi %17, %3 : vector<16x1xi32>
    %19 = vector.broadcast %c31_i32 : i32 to vector<16x1xi32>
    %20 = arith.minsi %19, %18 : vector<16x1xi32>
    %c32_i32 = arith.constant 32 : i32
    %21 = vector.broadcast %c32_i32 : i32 to vector<16x1xi32>
    %22 = arith.addi %15, %21 : vector<16x1xi32>
    %23 = vector.broadcast %20 : vector<16x1xi32> to vector<16x41xi32>
    %24 = arith.cmpi eq, %16, %23 : vector<16x41xi32>
    %25 = vector.broadcast %22 : vector<16x1xi32> to vector<16x41xi32>
    %26 = arith.cmpi eq, %16, %25 : vector<16x41xi32>
    %27 = arith.ori %24, %26 : vector<16x41xi1>
    %28 = arith.extui %27 : vector<16x41xi1> to vector<16x41xi32>
    %29 = arith.sitofp %28 : vector<16x41xi32> to vector<16x41xf32>
    %c0_9 = arith.constant 0 : index
    %c0_10 = arith.constant 0 : index
    %30 = vector.load %arg4[%c0_9, %c0_10] : memref<41x32xf32, #tpu.memory_space<vmem>>, vector<41x32xf32>
    %cst_11 = arith.constant dense<0.000000e+00> : vector<16x32xf32>
    %31 = tpu.matmul %29, %30, %cst_11 {dimension_numbers = #tpu.dot_dimension_numbers<[1], [0], [0], [1], [0, 0, 1, 1], [], []>} : vector<16x41xf32>, vector<41x32xf32>, vector<16x32xf32> -> vector<16x32xf32>
    %c0_12 = arith.constant 0 : index
    %c0_13 = arith.constant 0 : index
    %c0_14 = arith.constant 0 : index
    %32 = vector.load %arg5[%c0_12, %c0_13, %c0_14] : memref<1x16x32xf32, #tpu.memory_space<vmem>>, vector<1x16x32xf32>
    %33 = vector.shape_cast %32 : vector<1x16x32xf32> to vector<16x32xf32>
    %34 = vector.shape_cast %31 : vector<16x32xf32> to vector<1x16x32xf32>
    tpu.vector_store %arg5[%c0_12, %c0_13, %c0_14], %34 {strides = array<i32>} : memref<1x16x32xf32, #tpu.memory_space<vmem>>, vector<1x16x32xf32>,
    return
  }
  func.func @transform_0(%arg0: i32) -> (i32, i32, i32) {
    %c0_i32 = arith.constant 0 : i32
    %c0_i32_0 = arith.constant 0 : i32
    %c0_i32_1 = arith.constant 0 : i32
    return %arg0, %c0_i32, %c0_i32_0 : i32, i32, i32
  }
  func.func @transform_1(%arg0: i32) -> (i32, i32, i32) {
    %c0_i32 = arith.constant 0 : i32
    %c0_i32_0 = arith.constant 0 : i32
    %c0_i32_1 = arith.constant 0 : i32
    return %arg0, %c0_i32, %c0_i32_0 : i32, i32, i32
  }
  func.func @transform_2(%arg0: i32) -> (i32, i32) {
    %c0_i32 = arith.constant 0 : i32
    %c0_i32_0 = arith.constant 0 : i32
    %c0_i32_1 = arith.constant 0 : i32
    return %c0_i32, %c0_i32_0 : i32, i32
  }
  func.func @transform_3(%arg0: i32) -> (i32, i32) {
    %c0_i32 = arith.constant 0 : i32
    %c0_i32_0 = arith.constant 0 : i32
    %c0_i32_1 = arith.constant 0 : i32
    return %c0_i32, %c0_i32_0 : i32, i32
  }
  func.func @transform_4(%arg0: i32) -> (i32, i32, i32) {
    %c0_i32 = arith.constant 0 : i32
    %c0_i32_0 = arith.constant 0 : i32
    %c0_i32_1 = arith.constant 0 : i32
    return %arg0, %c0_i32, %c0_i32_0 : i32, i32, i32
  }
}

</mosaic_0001>

<llo_original>
// kernel: tpu_custom_call.1
$region0: #{tpu_custom_call.1}
  #allocation0 [shape = 'u32[]', space=smem, size = 0x4, offset = 0x4, fixed_abs, tag = 'smem constant byte address 0x4 - core index']
  #allocation1 [shape = 'u32[144,128]{1,0:T(1,128)}', space=vmem, size = 0x12000, scoped, tag = 'internal scratch']
  %s0 = inlined_call_operand.vmem [shape: s32[1,1,16], index: 0, kind: input, shape index: {}]
  %s1 = inlined_call_operand.vmem [shape: s32[1,16,1], index: 1, kind: input, shape index: {}]
  %s2 = inlined_call_operand.vmem [shape: s32[16,16], index: 2, kind: input, shape index: {}]
  %s3 = inlined_call_operand.vmem [shape: f32[41,32], index: 3, kind: input, shape index: {}]
  %s4 = inlined_call_operand.hbm [shape: f32[1,16,32], index: 4, kind: output, shape index: {}]
  %s5 = sld [smem:[#allocation0]]
  $region26: #{tpu_custom_call.1} parent=0
    _
  %s7 = ssub.s32 1, %s5
  %s8 = scalar_select 0, %s7, %s5
  $region1: #{tpu_custom_call.1} parent=0
    #allocation2 [shape = 'u8[8192]{0}', space=vmem, size = 0x2000, scoped, tag = 'output window, operand 0, single buffered']
    #allocation3 [shape = 's32[1]{0}', space=sflag, size = 0x4, scoped, tag = 'scoped memory for tpu_custom_call.1']
    %9 = vsyncpa [#allocation3], 0
    // Predicated region
    $region2: #{tpu_custom_call.1} parent=1 // pred_check
      _
    $region3: #{tpu_custom_call.1} parent=1 // pred_check_branch
      %11 = sbr.rel (0) target = $region5
    $region4: #{tpu_custom_call.1} parent=1 // pred_region
      _
    $region5: #{tpu_custom_call.1} parent=1 // pred_fallthru
      _
    // Predicated region
    $region6: #{tpu_custom_call.1} parent=1 // pred_check
      _
    $region7: #{tpu_custom_call.1} parent=1 // pred_check_branch
      %13 = sbr.rel (0) target = $region9
    $region8: #{tpu_custom_call.1} parent=1 // pred_region
      _
    $region9: #{tpu_custom_call.1} parent=1 // pred_fallthru
      _
    // Predicated region
    $region10: #{tpu_custom_call.1} parent=1 // pred_check
      _
    $region11: #{tpu_custom_call.1} parent=1 // pred_check_branch
      %15 = sbr.rel (0) target = $region13
    $region12: #{tpu_custom_call.1} parent=1 // pred_region
      _
    $region13: #{tpu_custom_call.1} parent=1 // pred_fallthru
      _
    // Predicated region
    $region14: #{tpu_custom_call.1} parent=1 // pred_check
      _
    $region15: #{tpu_custom_call.1} parent=1 // pred_check_branch
      %17 = sbr.rel (0) target = $region17
    $region16: #{tpu_custom_call.1} parent=1 // pred_region
      _
    $region17: #{tpu_custom_call.1} parent=1 // pred_fallthru
      _
    %v18 = vld [vmem:[%s0] sm:$0x1]
    %v19 = vld [vmem:[%s1] sm:$0xff]
    %v20 = vld [vmem:[%s1 + $0x8] sm:$0xff]
    %vm21 = vcmp.ne.s32.totalorder %v18, 0
    %v22 = vsel %vm21, 1, 0
    %vm23 = vcmp.ne.s32.totalorder %v19, 0
    %vm24 = vcmp.ne.s32.totalorder %v20, 0
    %v25 = vsel %vm23, 1, 0
    %v26 = vsel %vm24, 1, 0
    %v27 = vld [vmem:[%s2] sm:$0xff]
    %v28 = vld [vmem:[%s2 + $0x8] sm:$0xff]
    %v29 = vlaneseq
    %v30 = vshrl.u32 %v29, 7
    %v31 = vsub.s32 0, %v30
    %v32 = vrot.slane %v22, %v31
    %v33 = vmul.u32 %v27, %v32
    %v34 = vmul.u32 %v28, %v32
    %vm35 = vcmask 130048
    %v36 = vsel %vm35, %v33, 0
    %v37 = vand.u32 %v36, 65535
    %v38 = vshrl.u32 %v36, 16
    %v39 = vcvt.s32.f32 %v37
    %v40 = vcvt.s32.f32 %v38
    %41 = vadd.xlane.f32.xlu0 %v39
    %v42 = vpop.xlane.xlu0 %41
    %43 = vadd.xlane.f32.xlu0 %v40
    %v44 = vpop.xlane.xlu0 %43
    %v45 = vcvt.f32.s32 %v42
    %v46 = vcvt.f32.s32 %v44
    %v47 = vshll.u32 %v46, 16
    %v48 = vadd.s32 %v47, %v45
    %v49 = vsel %vm35, %v34, 0
    %v50 = vand.u32 %v49, 65535
    %v51 = vshrl.u32 %v49, 16
    %v52 = vcvt.s32.f32 %v50
    %v53 = vcvt.s32.f32 %v51
    %54 = vadd.xlane.f32.xlu0 %v52
    %v55 = vpop.xlane.xlu0 %54
    %56 = vadd.xlane.f32.xlu0 %v53
    %v57 = vpop.xlane.xlu0 %56
    %v58 = vcvt.f32.s32 %v55
    %v59 = vcvt.f32.s32 %v57
    %v60 = vshll.u32 %v59, 16
    %v61 = vadd.s32 %v60, %v58
    %v62 = vmul.u32 %v48, %v25
    %v63 = vmul.u32 %v61, %v26
    %v64 = vlaneseq
    %v65 = vand.u32 %v64, 127
    %vm66 = vcmp.gt.s32.totalorder %v19, 0
    %v67 = vsel %vm66, %v19, 0
    %vm68 = vcmp.gt.s32.totalorder %v20, 0
    %v69 = vsel %vm68, %v20, 0
    %vm70 = vcmp.lt.s32.totalorder %v67, 31
    %v71 = vsel %vm70, %v67, 31
    %vm72 = vcmp.lt.s32.totalorder %v69, 31
    %v73 = vsel %vm72, %v69, 31
    %v74 = vadd.s32 %v62, 32
    %v75 = vadd.s32 %v63, 32
    %76 = vset.pattern.permute.xlu0 0
    %77 = vperm.xlu0 %76, %v71
    %v78 = vpop.permute.xlu0 %77
    %79 = vset.pattern.permute.xlu0 0
    %80 = vperm.xlu0 %79, %v73
    %v81 = vpop.permute.xlu0 %80
    %vm82 = vcmp.eq.s32.totalorder %v65, %v78
    %vm83 = vcmp.eq.s32.totalorder %v65, %v81
    %84 = vset.pattern.permute.xlu0 0
    %85 = vperm.xlu0 %84, %v74
    %v86 = vpop.permute.xlu0 %85
    %87 = vset.pattern.permute.xlu0 0
    %88 = vperm.xlu0 %87, %v75
    %v89 = vpop.permute.xlu0 %88
    %vm90 = vcmp.eq.s32.totalorder %v65, %v86
    %vm91 = vcmp.eq.s32.totalorder %v65, %v89
    %vm92 = vmor %vm82, %vm90
    %vm93 = vmor %vm83, %vm91
    %v94 = vsel %vm92, 1, 0
    %v95 = vsel %vm93, 1, 0
    %v96 = vcvt.s32.f32 %v94
    %v97 = vcvt.s32.f32 %v95
    %v98 = vld [vmem:[%s3] sm:$0xff]
    %v99 = vld [vmem:[%s3 + $0x8] sm:$0xff]
    %v100 = vld [vmem:[%s3 + $0x10] sm:$0xff]
    %v101 = vld [vmem:[%s3 + $0x18] sm:$0xff]
    %v102 = vld [vmem:[%s3 + $0x20] sm:$0xff]
    %v103 = vld [vmem:[%s3 + $0x28] sm:$0x1]
    %vm104 = vcmask 334848
    %v106 = vsel %vm104, %v96, 0
    %v109 = vsel %vm104, %v97, 0
    %vm111 = vcmask 1040384
    %v113 = vsel %vm111, %v103, 0
    %115 = vmatprep.subr.mxu0 0.0
    %116 = vmatpush1.msra.mxu0 0.0
    %117 = vmatprep.subr.mxu0 0.0
    %118 = vmatpush1.msra.mxu0 0.0
    %119 = vmatprep.subr.mxu0 0.0
    %120 = vmatpush1.msra.mxu0 0.0
    %121 = vmatprep.subr.mxu0 0.0
    %122 = vmatpush1.msra.mxu0 0.0
    %123 = vmatprep.subr.mxu0 0.0
    %124 = vmatpush1.msra.mxu0 0.0
    %125 = vmatprep.subr.mxu0 0.0
    %126 = vmatpush1.msra.mxu0 0.0
    %127 = vmatprep.subr.mxu0 0.0
    %128 = vmatpush1.msra.mxu0 0.0
    %129 = vmatprep.subr.mxu0 0.0
    %130 = vmatpush1.msra.mxu0 0.0
    %131 = vmatprep.subr.mxu0 0.0
    %132 = vmatpush1.msra.mxu0 0.0
    %133 = vmatprep.subr.mxu0 0.0
    %134 = vmatpush1.msra.mxu0 0.0
    %135 = vmatprep.subr.mxu0 0.0
    %136 = vmatpush1.msra.mxu0 %v113
    %137 = vmatprep.subr.mxu0 0.0
    %138 = vmatpush1.msra.mxu0 %v102
    %139 = vmatprep.subr.mxu0 0.0
    %140 = vmatpush1.msra.mxu0 %v101
    %141 = vmatprep.subr.mxu0 0.0
    %142 = vmatpush1.msra.mxu0 %v100
    %143 = vmatprep.subr.mxu0 0.0
    %144 = vmatpush1.msra.mxu0 %v99
    %145 = vmatprep.subr.mxu0 0.0
    %146 = vmatpush1.msra.mxu0 %v98
    %147 = vmatprep.subr.mxu0 0.0
    %148 = vmatpush2.msra.mxu0 0.0
    %149 = vmatprep.subr.mxu0 0.0
    %150 = vmatpush2.msra.mxu0 0.0
    %151 = vmatprep.subr.mxu0 0.0
    %152 = vmatpush2.msra.mxu0 0.0
    %153 = vmatprep.subr.mxu0 0.0
    %154 = vmatpush2.msra.mxu0 0.0
    %155 = vmatprep.subr.mxu0 0.0
    %156 = vmatpush2.msra.mxu0 0.0
    %157 = vmatprep.subr.mxu0 0.0
    %158 = vmatpush2.msra.mxu0 0.0
    %159 = vmatprep.subr.mxu0 0.0
    %160 = vmatpush2.msra.mxu0 0.0
    %161 = vmatprep.subr.mxu0 0.0
    %162 = vmatpush2.msra.mxu0 0.0
    %163 = vmatprep.subr.mxu0 0.0
    %164 = vmatpush2.msra.mxu0 0.0
    %165 = vmatprep.subr.mxu0 0.0
    %166 = vmatpush2.msra.mxu0 0.0
    %167 = vmatprep.subr.mxu0 0.0
    %168 = vmatpush2.msra.mxu0 0.0
    %169 = vmatprep.subr.mxu0 0.0
    %170 = vmatpush2.msra.mxu0 0.0
    %171 = vmatprep.subr.mxu0 0.0
    %172 = vmatpush2.msra.mxu0 0.0
    %173 = vmatprep.subr.mxu0 0.0
    %174 = vmatpush2.msra.mxu0 0.0
    %175 = vmatprep.subr.mxu0 0.0
    %176 = vmatpush2.msra.mxu0 0.0
    %177 = vmatprep.subr.mxu0 0.0
    %178 = vmatpush2.msra.mxu0 0.0
    %179 = vmatprep.mubr.f32.mxu0 0.0
    %180 = vmatmul.mubr.f32.gmra.mxu0 %v106
    %v181 = vpop.f32.mrf.mxu0
    %v182 = vadd.f32 0.0, %v181
    %v183 = vpop.f32.mrf.mxu0
    %184 = vmatprep.mubr.f32.mxu0 0.0
    %185 = vmatmul.mubr.f32.gmra.mxu0 %v109
    %v186 = vpop.f32.mrf.mxu0
    %v187 = vadd.f32 0.0, %v186
    %v188 = vpop.f32.mrf.mxu0
    %189 = vdwg.mxu0
    %vm190 = vcmask 261120
    %191 = vst.msk [vmem:[#allocation2] sm:$0xff] %vm190, %v182
    %192 = vst.msk [vmem:[#allocation2 + $0x8] sm:$0xff] %vm190, %v187
    // Predicated region
    $region18: #{tpu_custom_call.1} parent=1 // pred_check
      _
    $region19: #{tpu_custom_call.1} parent=1 // pred_check_branch
      %194 = sbr.rel (0) target = $region21
    $region20: #{tpu_custom_call.1} parent=1 // pred_region
      %s196 = ssub.s32 256, 256
      %197 = vsyncadd [#allocation3], %s196
      %s198 = sshll.u32 [#allocation2], 4
      %s199 = int_to_ptr.vmem [resolvable:$true] %s198
      %204 = dma.vmem_to_hbm [thread:$0]  %s199, 256, %s4, [#allocation3], 128, 128, 8
    $region21: #{tpu_custom_call.1} parent=1 // pred_fallthru
      _
    // Predicated region
    $region22: #{tpu_custom_call.1} parent=1 // pred_check
      _
    $region23: #{tpu_custom_call.1} parent=1 // pred_check_branch
      %206 = sbr.rel (0) target = $region25
    $region24: #{tpu_custom_call.1} parent=1 // pred_region
      %207 = dma.done [#allocation3], 256
    $region25: #{tpu_custom_call.1} parent=1 // pred_fallthru
      _
    %208 = vsyncpa [#allocation3], 1

</llo_original>
